<compile_context>
chip_gen: v5e
topology: v5e:2x2
jax: 0.10.0
libtpu: 0.0.40
codegen_flags: <defaults>
</compile_context>

<pallas_src>
import functools

import jax
import jax.numpy as jnp
from jax.experimental import pallas as pl
from jax.experimental.pallas import tpu as pltpu


def _round_up(x, n):
    return ((x + n - 1) // n) * n


def _pad2d(a, rows, cols, dtype):
    """Cast + zero-pad a 2-D array up to (rows, cols)."""
    a = a.astype(dtype)
    r, c = a.shape
    if r == rows and c == cols:
        return a
    return jnp.pad(a, ((0, rows - r), (0, cols - c)))


def ffn_kernel(x_ref, w13_ref, w2_ref, o_ref, acc_ref, *, tile_h):
    j = pl.program_id(1)  # hidden-tile (reduction) axis — last grid axis

    @pl.when(j == 0)
    def _():
        acc_ref[...] = jnp.zeros_like(acc_ref)

    x = x_ref[...]                                              # (tm, dim_p) bf16
    # Fused gate+up projection: one MXU pass -> (tm, 2*tile_h) in f32.
    h = jnp.dot(x, w13_ref[...], preferred_element_type=jnp.float32)
    h1 = h[:, :tile_h]                                          # gate (w1) half
    h3 = h[:, tile_h:]                                          # up   (w3) half

    # SwiGLU gate: silu(h1) * h3   (sigmoid -> EUP, muls -> VPU).
    gated = (h1 * jax.nn.sigmoid(h1)) * h3

    # Partial down-projection for this hidden tile, accumulated in f32.
    acc_ref[...] += jnp.dot(gated.astype(w2_ref.dtype), w2_ref[...],
                            preferred_element_type=jnp.float32)

    @pl.when(j == pl.num_programs(1) - 1)
    def _():
        o_ref[...] = acc_ref[...].astype(o_ref.dtype)


def ffn_forward(x, w1, w2, w3, *, tile_m=256, tile_h=512,
                compute_dtype=jnp.bfloat16):
    """x: (batch, seq, dim); w1, w3: (hidden, dim); w2: (dim, hidden)
    (PyTorch nn.Linear weight layout).  Returns (batch, seq, dim)."""
    batch, seq, dim = x.shape
    hidden = w1.shape[0]
    m = batch * seq

    # Pad everything to lane/sublane-friendly multiples of 128 and pick tile
    # sizes that divide the padded extents exactly.
    dim_p = _round_up(dim, 128)
    tile_m = min(tile_m, _round_up(m, 128))
    m_p = _round_up(m, tile_m)
    hidden_p = _round_up(hidden, 128)
    tile_h = min(tile_h, hidden_p)
    hidden_p = _round_up(hidden_p, tile_h)

    m_tiles = m_p // tile_m
    h_tiles = hidden_p // tile_h

    # Zero-pad + cast to bf16 (f32 accumulation inside the kernel keeps accuracy).
    x2d = _pad2d(x.reshape(m, dim), m_p, dim_p, compute_dtype)
    w1t = _pad2d(w1.T, dim_p, hidden_p, compute_dtype)
    w3t = _pad2d(w3.T, dim_p, hidden_p, compute_dtype)
    w2t = _pad2d(w2.T, hidden_p, dim_p, compute_dtype)

    # Fuse w1/w3 into one weight whose hidden-tile block j holds
    # [w1 columns of tile j | w3 columns of tile j] -> one MXU pass per step.
    w13 = jnp.concatenate(
        [w1t.reshape(dim_p, h_tiles, tile_h),
         w3t.reshape(dim_p, h_tiles, tile_h)],
        axis=-1,
    ).reshape(dim_p, 2 * hidden_p)

    in_bytes = jnp.dtype(compute_dtype).itemsize
    out_bytes = jnp.dtype(x.dtype).itemsize

    # Actual per-call VMEM footprint: double-buffered input/weight/output tiles
    # plus the f32 accumulator scratch.  Cap below v7x's 64 MiB physical VMEM.
    vmem_bytes = (
        2 * tile_m * dim_p * in_bytes            # x tile
        + 2 * dim_p * (2 * tile_h) * in_bytes    # fused w1/w3 tile
        + 2 * tile_h * dim_p * in_bytes          # w2 tile
        + 2 * tile_m * dim_p * out_bytes         # output tile
        + tile_m * dim_p * 4                     # f32 accumulator
    )
    vmem_limit = min(int(vmem_bytes * 1.5) + (2 << 20), 60 * 1024 * 1024)

    cost = pl.CostEstimate(
        flops=6 * m * dim * hidden,              # two up-proj + one down-proj matmuls
        transcendentals=m * hidden,              # sigmoid in silu
        bytes_accessed=(m * dim + 3 * dim * hidden) * in_bytes
        + m * dim * out_bytes,
    )

    out2d = pl.pallas_call(
        functools.partial(ffn_kernel, tile_h=tile_h),
        out_shape=jax.ShapeDtypeStruct((m_p, dim_p), x.dtype),
        grid_spec=pltpu.PrefetchScalarGridSpec(
            num_scalar_prefetch=0,
            grid=(m_tiles, h_tiles),
            in_specs=[
                # x row-tile: constant across the hidden (reduction) axis, so
                # Pallas keeps it resident instead of re-DMAing it per step.
                pl.BlockSpec((tile_m, dim_p), lambda i, j: (i, 0)),
                # fused w1/w3 tile: streams along the hidden axis.
                pl.BlockSpec((dim_p, 2 * tile_h), lambda i, j: (0, j)),
                # w2 tile: streams along the hidden axis.
                pl.BlockSpec((tile_h, dim_p), lambda i, j: (j, 0)),
            ],
            out_specs=pl.BlockSpec((tile_m, dim_p), lambda i, j: (i, 0)),
            scratch_shapes=[pltpu.VMEM((tile_m, dim_p), jnp.float32)],
        ),
        compiler_params=pltpu.CompilerParams(
            dimension_semantics=("parallel", "arbitrary"),
            vmem_limit_bytes=vmem_limit,
        ),
        cost_estimate=cost,
    )(x2d, w13, w2t)

    return out2d[:m, :dim].reshape(batch, seq, dim)


def ffn_reference(x, w1, w2, w3):
    h1 = jnp.einsum("bsd,hd->bsh", x, w1)
    h3 = jnp.einsum("bsd,hd->bsh", x, w3)
    g = jax.nn.silu(h1) * h3
    return jnp.einsum("bsh,dh->bsd", g, w2)


if __name__ == "__main__":
    # Config (mirrors BeruConfig hidden_dim derivation):
    #   dim=32, hidden_dim=None, multiple_of=32, dropout=0.0
    dim = 32
    multiple_of = 32
    hidden_dim = 4 * dim
    hidden_dim = int(2 * hidden_dim / 3)
    hidden_dim = multiple_of * ((hidden_dim + multiple_of - 1) // multiple_of)  # -> 96

    batch, seq = 2, 8

    key = jax.random.PRNGKey(0)
    kx, k1, k2, k3 = jax.random.split(key, 4)

    x = jax.random.normal(kx, (batch, seq, dim), dtype=jnp.float32)
    # Deterministic weight init (nn.Linear layout: (out_features, in_features)).
    w1 = jax.random.normal(k1, (hidden_dim, dim), dtype=jnp.float32) * 0.05
    w2 = jax.random.normal(k2, (dim, hidden_dim), dtype=jnp.float32) * 0.05
    w3 = jax.random.normal(k3, (hidden_dim, dim), dtype=jnp.float32) * 0.05

    out = ffn_forward(x, w1, w2, w3)
    out = jax.block_until_ready(out)

    ref = ffn_reference(x, w1, w2, w3)
    assert out.shape == (batch, seq, dim)
    # bf16 compute with f32 accumulation -> loosened tolerance vs f32 reference.
    max_err = float(jnp.max(jnp.abs(out - ref)))
    assert jnp.allclose(out, ref, atol=2e-2, rtol=2e-2), (
        f"mismatch vs reference (max abs err {max_err})")

    print("KERNEL_OK")
</pallas_src>

<mosaic_0001>
module attributes {stable_mosaic.version = 11 : i64} {
  func.func @ffn_kernel(%arg0: i32, %arg1: i32, %arg2: memref<128x128xbf16, #tpu.memory_space<vmem>>, %arg3: memref<128x256xbf16, #tpu.memory_space<vmem>>, %arg4: memref<128x128xbf16, #tpu.memory_space<vmem>>, %arg5: memref<128x128xf32, #tpu.memory_space<vmem>>, %arg6: memref<128x128xf32, #tpu.memory_space<vmem>>) attributes {dimension_semantics = [#tpu.dimension_semantics<parallel>, #tpu.dimension_semantics<arbitrary>], iteration_bounds = array<i64: 1, 1>, scalar_prefetch = 0 : i64, scratch_operands = 1 : i64, tpu.core_type = #tpu.core_type<tc>, window_params = [{transform_indices = @transform_0, window_bounds = array<i64: 128, 128>}, {transform_indices = @transform_1, window_bounds = array<i64: 128, 256>}, {transform_indices = @transform_2, window_bounds = array<i64: 128, 128>}, {transform_indices = @transform_3, window_bounds = array<i64: 128, 128>}]} {
    %c0_i32 = arith.constant 0 : i32
    %0 = arith.cmpi eq, %arg1, %c0_i32 : i32
    %1 = arith.extui %0 : i1 to i32
    %c0_i32_0 = arith.constant 0 : i32
    %2 = arith.cmpi ne, %1, %c0_i32_0 : i32
    scf.if %2 {
      %cst_14 = arith.constant 0.000000e+00 : f32
      %24 = vector.broadcast %cst_14 : f32 to vector<128x128xf32>
      %c0_15 = arith.constant 0 : index
      %c0_16 = arith.constant 0 : index
      %25 = vector.load %arg6[%c0_15, %c0_16] : memref<128x128xf32, #tpu.memory_space<vmem>>, vector<128x128xf32>
      tpu.vector_store %arg6[%c0_15, %c0_16], %24 {strides = array<i32>} : memref<128x128xf32, #tpu.memory_space<vmem>>, vector<128x128xf32>,
    } else {
    }
    %c0 = arith.constant 0 : index
    %c0_1 = arith.constant 0 : index
    %3 = vector.load %arg2[%c0, %c0_1] : memref<128x128xbf16, #tpu.memory_space<vmem>>, vector<128x128xbf16>
    %c0_2 = arith.constant 0 : index
    %c0_3 = arith.constant 0 : index
    %4 = vector.load %arg3[%c0_2, %c0_3] : memref<128x256xbf16, #tpu.memory_space<vmem>>, vector<128x256xbf16>
    %cst = arith.constant dense<0.000000e+00> : vector<128x256xf32>
    %5 = tpu.matmul %3, %4, %cst {dimension_numbers = #tpu.dot_dimension_numbers<[1], [0], [0], [1], [0, 0, 1, 1], [], []>} : vector<128x128xbf16>, vector<128x256xbf16>, vector<128x256xf32> -> vector<128x256xf32>
    %6 = vector.extract_strided_slice %5 {offsets = [0, 0], sizes = [128, 128], strides = [1, 1]} : vector<128x256xf32> to vector<128x128xf32>
    %7 = vector.extract_strided_slice %5 {offsets = [0, 128], sizes = [128, 128], strides = [1, 1]} : vector<128x256xf32> to vector<128x128xf32>
    %8 = arith.negf %6 : vector<128x128xf32>
    %9 = math.exp %8 : vector<128x128xf32>
    %cst_4 = arith.constant 1.000000e+00 : f32
    %10 = vector.broadcast %cst_4 : f32 to vector<128x128xf32>
    %11 = arith.addf %10, %9 : vector<128x128xf32>
    %12 = arith.divf %10, %11 : vector<128x128xf32>
    %13 = arith.mulf %6, %12 : vector<128x128xf32>
    %14 = arith.mulf %13, %7 : vector<128x128xf32>
    %c0_5 = arith.constant 0 : index
    %c0_6 = arith.constant 0 : index
    %15 = vector.load %arg6[%c0_5, %c0_6] : memref<128x128xf32, #tpu.memory_space<vmem>>, vector<128x128xf32>
    %16 = arith.truncf %14 : vector<128x128xf32> to vector<128x128xbf16>
    %c0_7 = arith.constant 0 : index
    %c0_8 = arith.constant 0 : index
    %17 = vector.load %arg4[%c0_7, %c0_8] : memref<128x128xbf16, #tpu.memory_space<vmem>>, vector<128x128xbf16>
    %cst_9 = arith.constant dense<0.000000e+00> : vector<128x128xf32>
    %18 = tpu.matmul %16, %17, %cst_9 {dimension_numbers = #tpu.dot_dimension_numbers<[1], [0], [0], [1], [0, 0, 1, 1], [], []>} : vector<128x128xbf16>, vector<128x128xbf16>, vector<128x128xf32> -> vector<128x128xf32>
    %19 = arith.addf %15, %18 : vector<128x128xf32>
    %c0_10 = arith.constant 0 : index
    %c0_11 = arith.constant 0 : index
    %20 = vector.load %arg6[%c0_10, %c0_11] : memref<128x128xf32, #tpu.memory_space<vmem>>, vector<128x128xf32>
    tpu.vector_store %arg6[%c0_10, %c0_11], %19 {strides = array<i32>} : memref<128x128xf32, #tpu.memory_space<vmem>>, vector<128x128xf32>,
    %c0_i32_12 = arith.constant 0 : i32
    %21 = arith.cmpi eq, %arg1, %c0_i32_12 : i32
    %22 = arith.extui %21 : i1 to i32
    %c0_i32_13 = arith.constant 0 : i32
    %23 = arith.cmpi ne, %22, %c0_i32_13 : i32
    scf.if %23 {
      %c0_14 = arith.constant 0 : index
      %c0_15 = arith.constant 0 : index
      %24 = vector.load %arg6[%c0_14, %c0_15] : memref<128x128xf32, #tpu.memory_space<vmem>>, vector<128x128xf32>
      %c0_16 = arith.constant 0 : index
      %c0_17 = arith.constant 0 : index
      %25 = vector.load %arg5[%c0_16, %c0_17] : memref<128x128xf32, #tpu.memory_space<vmem>>, vector<128x128xf32>
      tpu.vector_store %arg5[%c0_16, %c0_17], %24 {strides = array<i32>} : memref<128x128xf32, #tpu.memory_space<vmem>>, vector<128x128xf32>,
    } else {
    }
    return
  }
  func.func @transform_0(%arg0: i32, %arg1: i32) -> (i32, i32) {
    %c0_i32 = arith.constant 0 : i32
    %c0_i32_0 = arith.constant 0 : i32
    return %arg0, %c0_i32 : i32, i32
  }
  func.func @transform_1(%arg0: i32, %arg1: i32) -> (i32, i32) {
    %c0_i32 = arith.constant 0 : i32
    %c0_i32_0 = arith.constant 0 : i32
    return %c0_i32, %arg1 : i32, i32
  }
  func.func @transform_2(%arg0: i32, %arg1: i32) -> (i32, i32) {
    %c0_i32 = arith.constant 0 : i32
    %c0_i32_0 = arith.constant 0 : i32
    return %arg1, %c0_i32 : i32, i32
  }
  func.func @transform_3(%arg0: i32, %arg1: i32) -> (i32, i32) {
    %c0_i32 = arith.constant 0 : i32
    %c0_i32_0 = arith.constant 0 : i32
    return %arg0, %c0_i32 : i32, i32
  }
}

</mosaic_0001>

<llo_original>
// kernel: tpu_custom_call.1
$region0: #{tpu_custom_call.1}
  #allocation0 [shape = 'u32[]', space=smem, size = 0x4, offset = 0x4, fixed_abs, tag = 'smem constant byte address 0x4 - core index']
  #allocation1 [shape = 'u32[72,128]{1,0:T(1,128)}', space=vmem, size = 0x9000, scoped, tag = 'internal scratch']
  #allocation2 [shape = 'f32[128,128]{1,0:T(8,128)}', space=vmem, size = 0x10000, scoped, tag = 'scratch operand']
  %s0 = inlined_call_operand.hbm [shape: bf16[128,128], index: 0, kind: input, shape index: {}]
  %s1 = inlined_call_operand.hbm [shape: bf16[128,256], index: 1, kind: input, shape index: {}]
  %s2 = inlined_call_operand.hbm [shape: bf16[128,128], index: 2, kind: input, shape index: {}]
  %s3 = inlined_call_operand.hbm [shape: f32[128,128], index: 3, kind: output, shape index: {}]
  %s4 = sld [smem:[#allocation0]]
  $region42: #{tpu_custom_call.1} parent=0
    _
  %s6 = ssub.s32 1, %s4
  %s7 = scalar_select 0, %s6, %s4
  $region1: #{tpu_custom_call.1} parent=0
    #allocation3 [shape = 'u8[32768]{0}', space=vmem, size = 0x8000, scoped, tag = 'input window, operand 0, single buffered']
    #allocation4 [shape = 's32[1]{0}', space=sflag, size = 0x4, scoped, tag = 'scoped memory for tpu_custom_call.1']
    #allocation5 [shape = 's32[1]{0}', space=sflag, size = 0x4, scoped, tag = 'scoped memory for tpu_custom_call.1']
    #allocation6 [shape = 'u8[65536]{0}', space=vmem, size = 0x10000, scoped, tag = 'input window, operand 1, single buffered']
    #allocation7 [shape = 's32[1]{0}', space=sflag, size = 0x4, scoped, tag = 'scoped memory for tpu_custom_call.1']
    #allocation8 [shape = 'u8[32768]{0}', space=vmem, size = 0x8000, scoped, tag = 'input window, operand 2, single buffered']
    #allocation9 [shape = 'u8[65536]{0}', space=vmem, size = 0x10000, scoped, tag = 'output window, operand 0, single buffered']
    %8 = vsyncpa [#allocation4], 0
    %9 = vsyncpa [#allocation7], 0
    %10 = vsyncpa [#allocation5], 0
    // Predicated region
    $region2: #{tpu_custom_call.1} parent=1 // pred_check
      _
    $region3: #{tpu_custom_call.1} parent=1 // pred_check_branch
      %12 = sbr.rel (0) target = $region5
    $region4: #{tpu_custom_call.1} parent=1 // pred_region
      %14 = vsyncadd [#allocation4], 0
      %s15 = sshll.u32 %s0, 4
      %s16 = int_to_ptr.hbm [resolvable:$true] %s15
      %s17 = sshll.u32 [#allocation3], 4
      %s18 = int_to_ptr.vmem [resolvable:$true] %s17
      %23 = dma.hbm_to_vmem [thread:$0]  %s16, 1024, %s18, [#allocation4], 64, 64, 4
    $region5: #{tpu_custom_call.1} parent=1 // pred_fallthru
      _
    // Predicated region
    $region6: #{tpu_custom_call.1} parent=1 // pred_check
      _
    $region7: #{tpu_custom_call.1} parent=1 // pred_check_branch
      %25 = sbr.rel (0) target = $region9
    $region8: #{tpu_custom_call.1} parent=1 // pred_region
      %27 = vsyncadd [#allocation7], 0
      %s28 = sshll.u32 %s1, 4
      %s29 = int_to_ptr.hbm [resolvable:$true] %s28
      %s30 = sshll.u32 [#allocation6], 4
      %s31 = int_to_ptr.vmem [resolvable:$true] %s30
      %36 = dma.hbm_to_vmem [thread:$0]  %s29, 2048, %s31, [#allocation7], 128, 128, 8
    $region9: #{tpu_custom_call.1} parent=1 // pred_fallthru
      _
    // Predicated region
    $region10: #{tpu_custom_call.1} parent=1 // pred_check
      _
    $region11: #{tpu_custom_call.1} parent=1 // pred_check_branch
      %38 = sbr.rel (0) target = $region13
    $region12: #{tpu_custom_call.1} parent=1 // pred_region
      %40 = vsyncadd [#allocation7], 0
      %s41 = sshll.u32 %s2, 4
      %s42 = int_to_ptr.hbm [resolvable:$true] %s41
      %s43 = sshll.u32 [#allocation8], 4
      %s44 = int_to_ptr.vmem [resolvable:$true] %s43
      %49 = dma.hbm_to_vmem [thread:$0]  %s42, 1024, %s44, [#allocation7], 64, 64, 4
    $region13: #{tpu_custom_call.1} parent=1 // pred_fallthru
      _
    // Predicated region
    $region14: #{tpu_custom_call.1} parent=1 // pred_check
      _
    $region15: #{tpu_custom_call.1} parent=1 // pred_check_branch
      %51 = sbr.rel (0) target = $region17
    $region16: #{tpu_custom_call.1} parent=1 // pred_region
      %53 = dma.done [#allocation4], 1024
    $region17: #{tpu_custom_call.1} parent=1 // pred_fallthru
      _
    // Predicated region
    $region18: #{tpu_custom_call.1} parent=1 // pred_check
      _
    $region19: #{tpu_custom_call.1} parent=1 // pred_check_branch
      %55 = sbr.rel (0) target = $region21
    $region20: #{tpu_custom_call.1} parent=1 // pred_region
      %57 = dma.done [#allocation7], 2048
    $region21: #{tpu_custom_call.1} parent=1 // pred_fallthru
      _
    // Predicated region
    $region22: #{tpu_custom_call.1} parent=1 // pred_check
      _
    $region23: #{tpu_custom_call.1} parent=1 // pred_check_branch
      %59 = sbr.rel (0) target = $region25
    $region24: #{tpu_custom_call.1} parent=1 // pred_region
      %61 = dma.done [#allocation7], 1024
    $region25: #{tpu_custom_call.1} parent=1 // pred_fallthru
      _
    %p62 = scmp.eq.s32.totalorder 0, 0
    // Predicated region
    $region26: #{tpu_custom_call.1} parent=1 // pred_check
      %p63 = pneg %p62
    $region27: #{tpu_custom_call.1} parent=1 // pred_check_branch
      %65 = sbr.rel (%p63) target = $region29
    $region28: #{tpu_custom_call.1} parent=1 // pred_region
      %66 = vst [vmem:[#allocation2] sm:$0xff] 0.0
      %67 = vst [vmem:[#allocation2 + $0x8] sm:$0xff] 0.0
      %68 = vst [vmem:[#allocation2 + $0x10] sm:$0xff] 0.0
      %69 = vst [vmem:[#allocation2 + $0x18] sm:$0xff] 0.0
      %70 = vst [vmem:[#allocation2 + $0x20] sm:$0xff] 0.0
      %71 = vst [vmem:[#allocation2 + $0x28] sm:$0xff] 0.0
      %72 = vst [vmem:[#allocation2 + $0x30] sm:$0xff] 0.0
      %73 = vst [vmem:[#allocation2 + $0x38] sm:$0xff] 0.0
      %74 = vst [vmem:[#allocation2 + $0x40] sm:$0xff] 0.0
      %75 = vst [vmem:[#allocation2 + $0x48] sm:$0xff] 0.0
      %76 = vst [vmem:[#allocation2 + $0x50] sm:$0xff] 0.0
      %77 = vst [vmem:[#allocation2 + $0x58] sm:$0xff] 0.0
      %78 = vst [vmem:[#allocation2 + $0x60] sm:$0xff] 0.0
      %79 = vst [vmem:[#allocation2 + $0x68] sm:$0xff] 0.0
      %80 = vst [vmem:[#allocation2 + $0x70] sm:$0xff] 0.0
      %81 = vst [vmem:[#allocation2 + $0x78] sm:$0xff] 0.0
    $region29: #{tpu_custom_call.1} parent=1 // pred_fallthru
      _
    %v82 = vld [vmem:[#allocation3] sm:$0xf]
    %v83 = vld [vmem:[#allocation3 + $0x4] sm:$0xf]
    %v84 = vld [vmem:[#allocation3 + $0x8] sm:$0xf]
    %v85 = vld [vmem:[#allocation3 + $0xc] sm:$0xf]
    %v86 = vld [vmem:[#allocation3 + $0x10] sm:$0xf]
    %v87 = vld [vmem:[#allocation3 + $0x14] sm:$0xf]
    %v88 = vld [vmem:[#allocation3 + $0x18] sm:$0xf]
    %v89 = vld [vmem:[#allocation3 + $0x1c] sm:$0xf]
    %v90 = vld [vmem:[#allocation3 + $0x20] sm:$0xf]
    %v91 = vld [vmem:[#allocation3 + $0x24] sm:$0xf]
    %v92 = vld [vmem:[#allocation3 + $0x28] sm:$0xf]
    %v93 = vld [vmem:[#allocation3 + $0x2c] sm:$0xf]
    %v94 = vld [vmem:[#allocation3 + $0x30] sm:$0xf]
    %v95 = vld [vmem:[#allocation3 + $0x34] sm:$0xf]
    %v96 = vld [vmem:[#allocation3 + $0x38] sm:$0xf]
    %v97 = vld [vmem:[#allocation3 + $0x3c] sm:$0xf]
    %v98 = vld [vmem:[#allocation6] sm:$0xff]
    %v99 = vld [vmem:[#allocation6 + $0x8] sm:$0xff]
    %v100 = vld [vmem:[#allocation6 + $0x10] sm:$0xff]
    %v101 = vld [vmem:[#allocation6 + $0x18] sm:$0xff]
    %v102 = vld [vmem:[#allocation6 + $0x20] sm:$0xff]
    %v103 = vld [vmem:[#allocation6 + $0x28] sm:$0xff]
    %v104 = vld [vmem:[#allocation6 + $0x30] sm:$0xff]
    %v105 = vld [vmem:[#allocation6 + $0x38] sm:$0xff]
    %v106 = vld [vmem:[#allocation6 + $0x40] sm:$0xff]
    %v107 = vld [vmem:[#allocation6 + $0x48] sm:$0xff]
    %v108 = vld [vmem:[#allocation6 + $0x50] sm:$0xff]
    %v109 = vld [vmem:[#allocation6 + $0x58] sm:$0xff]
    %v110 = vld [vmem:[#allocation6 + $0x60] sm:$0xff]
    %v111 = vld [vmem:[#allocation6 + $0x68] sm:$0xff]
    %v112 = vld [vmem:[#allocation6 + $0x70] sm:$0xff]
    %v113 = vld [vmem:[#allocation6 + $0x78] sm:$0xff]
    %v130 = vunpack.c.l.b16 %v82
    %v131 = vunpack.c.l.b16 %v83
    %v132 = vunpack.c.l.b16 %v84
    %v133 = vunpack.c.l.b16 %v85
    %v134 = vunpack.c.l.b16 %v86
    %v135 = vunpack.c.l.b16 %v87
    %v136 = vunpack.c.l.b16 %v88
    %v137 = vunpack.c.l.b16 %v89
    %v138 = vunpack.c.l.b16 %v90
    %v139 = vunpack.c.l.b16 %v91
    %v140 = vunpack.c.l.b16 %v92
    %v141 = vunpack.c.l.b16 %v93
    %v142 = vunpack.c.l.b16 %v94
    %v143 = vunpack.c.l.b16 %v95
    %v144 = vunpack.c.l.b16 %v96
    %v145 = vunpack.c.l.b16 %v97
    %v146 = vpack.c.b16 %v131, %v130
    %v147 = vpack.c.b16 %v133, %v132
    %v148 = vpack.c.b16 %v135, %v134
    %v149 = vpack.c.b16 %v137, %v136
    %v150 = vpack.c.b16 %v139, %v138
    %v151 = vpack.c.b16 %v141, %v140
    %v152 = vpack.c.b16 %v143, %v142
    %v153 = vpack.c.b16 %v145, %v144
    %v178 = vunpack.c.l.b16 %v98
    %v179 = vunpack.c.h.b16 %v98
    %v180 = vunpack.c.l.b16 %v99
    %v181 = vunpack.c.h.b16 %v99
    %v182 = vunpack.c.l.b16 %v100
    %v183 = vunpack.c.h.b16 %v100
    %v184 = vunpack.c.l.b16 %v101
    %v185 = vunpack.c.h.b16 %v101
    %v186 = vunpack.c.l.b16 %v102
    %v187 = vunpack.c.h.b16 %v102
    %v188 = vunpack.c.l.b16 %v103
    %v189 = vunpack.c.h.b16 %v103
    %v190 = vunpack.c.l.b16 %v104
    %v191 = vunpack.c.h.b16 %v104
    %v192 = vunpack.c.l.b16 %v105
    %v193 = vunpack.c.h.b16 %v105
    %v194 = vunpack.c.l.b16 %v106
    %v195 = vunpack.c.h.b16 %v106
    %v196 = vunpack.c.l.b16 %v107
    %v197 = vunpack.c.h.b16 %v107
    %v198 = vunpack.c.l.b16 %v108
    %v199 = vunpack.c.h.b16 %v108
    %v200 = vunpack.c.l.b16 %v109
    %v201 = vunpack.c.h.b16 %v109
    %v202 = vunpack.c.l.b16 %v110
    %v203 = vunpack.c.h.b16 %v110
    %v204 = vunpack.c.l.b16 %v111
    %v205 = vunpack.c.h.b16 %v111
    %v206 = vunpack.c.l.b16 %v112
    %v207 = vunpack.c.h.b16 %v112
    %v208 = vunpack.c.l.b16 %v113
    %v209 = vunpack.c.h.b16 %v113
    %v210 = vpack.c.b16 %v180, %v178
    %v211 = vpack.c.b16 %v181, %v179
    %v212 = vpack.c.b16 %v184, %v182
    %v213 = vpack.c.b16 %v185, %v183
    %v214 = vpack.c.b16 %v188, %v186
    %v215 = vpack.c.b16 %v189, %v187
    %v216 = vpack.c.b16 %v192, %v190
    %v217 = vpack.c.b16 %v193, %v191
    %v218 = vpack.c.b16 %v196, %v194
    %v219 = vpack.c.b16 %v197, %v195
    %v220 = vpack.c.b16 %v200, %v198
    %v221 = vpack.c.b16 %v201, %v199
    %v222 = vpack.c.b16 %v204, %v202
    %v223 = vpack.c.b16 %v205, %v203
    %v224 = vpack.c.b16 %v208, %v206
    %v225 = vpack.c.b16 %v209, %v207
    %242 = vmatpush.bf16.msra.mxu0 %v224
    %243 = vmatpush.bf16.msra.mxu0 %v222
    %244 = vmatpush.bf16.msra.mxu0 %v220
    %245 = vmatpush.bf16.msra.mxu0 %v218
    %246 = vmatpush.bf16.msra.mxu0 %v216
    %247 = vmatpush.bf16.msra.mxu0 %v214
    %248 = vmatpush.bf16.msra.mxu0 %v212
    %249 = vmatpush.bf16.msra.mxu0 %v210
    %250 = vmatmul.bf16.gmra.mxu0 %v146
    %v251 = vpop.f32.mrf.mxu0
    %v252 = vadd.f32 0.0, %v251
    %v253 = vpop.f32.mrf.mxu0
    %v254 = vadd.f32 0.0, %v253
    %255 = vmatmul.bf16.gmra.mxu0 %v147
    %v256 = vpop.f32.mrf.mxu0
    %v257 = vadd.f32 0.0, %v256
    %v258 = vpop.f32.mrf.mxu0
    %v259 = vadd.f32 0.0, %v258
    %260 = vmatmul.bf16.gmra.mxu0 %v148
    %v261 = vpop.f32.mrf.mxu0
    %v262 = vadd.f32 0.0, %v261
    %v263 = vpop.f32.mrf.mxu0
    %v264 = vadd.f32 0.0, %v263
    %265 = vmatmul.bf16.gmra.mxu0 %v149
    %v266 = vpop.f32.mrf.mxu0
    %v267 = vadd.f32 0.0, %v266
    %v268 = vpop.f32.mrf.mxu0
    %v269 = vadd.f32 0.0, %v268
    %270 = vmatmul.bf16.gmra.mxu0 %v150
    %v271 = vpop.f32.mrf.mxu0
    %v272 = vadd.f32 0.0, %v271
    %v273 = vpop.f32.mrf.mxu0
    %v274 = vadd.f32 0.0, %v273
    %275 = vmatmul.bf16.gmra.mxu0 %v151
    %v276 = vpop.f32.mrf.mxu0
    %v277 = vadd.f32 0.0, %v276
    %v278 = vpop.f32.mrf.mxu0
    %v279 = vadd.f32 0.0, %v278
    %280 = vmatmul.bf16.gmra.mxu0 %v152
    %v281 = vpop.f32.mrf.mxu0
    %v282 = vadd.f32 0.0, %v281
    %v283 = vpop.f32.mrf.mxu0
    %v284 = vadd.f32 0.0, %v283
    %285 = vmatmul.bf16.gmra.mxu0 %v153
    %v286 = vpop.f32.mrf.mxu0
    %v287 = vadd.f32 0.0, %v286
    %v288 = vpop.f32.mrf.mxu0
    %v289 = vadd.f32 0.0, %v288
    %290 = vdwg.mxu0
    %291 = vmatpush.bf16.msra.mxu0 %v225
    %292 = vmatpush.bf16.msra.mxu0 %v223
    %293 = vmatpush.bf16.msra.mxu0 %v221
    %294 = vmatpush.bf16.msra.mxu0 %v219
    %295 = vmatpush.bf16.msra.mxu0 %v217
    %296 = vmatpush.bf16.msra.mxu0 %v215
    %297 = vmatpush.bf16.msra.mxu0 %v213
    %298 = vmatpush.bf16.msra.mxu0 %v211
    %299 = vmatmul.bf16.gmra.mxu0 %v146
    %v300 = vpop.f32.mrf.mxu0
    %v301 = vadd.f32 0.0, %v300
    %v302 = vpop.f32.mrf.mxu0
    %v303 = vadd.f32 0.0, %v302
    %304 = vmatmul.bf16.gmra.mxu0 %v147
    %v305 = vpop.f32.mrf.mxu0
    %v306 = vadd.f32 0.0, %v305
    %v307 = vpop.f32.mrf.mxu0
    %v308 = vadd.f32 0.0, %v307
    %309 = vmatmul.bf16.gmra.mxu0 %v148
    %v310 = vpop.f32.mrf.mxu0
    %v311 = vadd.f32 0.0, %v310
    %v312 = vpop.f32.mrf.mxu0
    %v313 = vadd.f32 0.0, %v312
    %314 = vmatmul.bf16.gmra.mxu0 %v149
    %v315 = vpop.f32.mrf.mxu0
    %v316 = vadd.f32 0.0, %v315
    %v317 = vpop.f32.mrf.mxu0
    %v318 = vadd.f32 0.0, %v317
    %319 = vmatmul.bf16.gmra.mxu0 %v150
    %v320 = vpop.f32.mrf.mxu0
    %v321 = vadd.f32 0.0, %v320
    %v322 = vpop.f32.mrf.mxu0
    %v323 = vadd.f32 0.0, %v322
    %324 = vmatmul.bf16.gmra.mxu0 %v151
    %v325 = vpop.f32.mrf.mxu0
    %v326 = vadd.f32 0.0, %v325
    %v327 = vpop.f32.mrf.mxu0
    %v328 = vadd.f32 0.0, %v327
    %329 = vmatmul.bf16.gmra.mxu0 %v152
    %v330 = vpop.f32.mrf.mxu0
    %v331 = vadd.f32 0.0, %v330
    %v332 = vpop.f32.mrf.mxu0
    %v333 = vadd.f32 0.0, %v332
    %334 = vmatmul.bf16.gmra.mxu0 %v153
    %v335 = vpop.f32.mrf.mxu0
    %v336 = vadd.f32 0.0, %v335
    %v337 = vpop.f32.mrf.mxu0
    %v338 = vadd.f32 0.0, %v337
    %339 = vdwg.mxu0
    %v340 = vxor.u32 %v252, 2147483648
    %v341 = vxor.u32 %v254, 2147483648
    %v342 = vxor.u32 %v257, 2147483648
    %v343 = vxor.u32 %v259, 2147483648
    %v344 = vxor.u32 %v262, 2147483648
    %v345 = vxor.u32 %v264, 2147483648
    %v346 = vxor.u32 %v267, 2147483648
    %v347 = vxor.u32 %v269, 2147483648
    %v348 = vxor.u32 %v272, 2147483648
    %v349 = vxor.u32 %v274, 2147483648
    %v350 = vxor.u32 %v277, 2147483648
    %v351 = vxor.u32 %v279, 2147483648
    %v352 = vxor.u32 %v282, 2147483648
    %v353 = vxor.u32 %v284, 2147483648
    %v354 = vxor.u32 %v287, 2147483648
    %v355 = vxor.u32 %v289, 2147483648
    %v356 = vmul.f32 %v340, 1.442695
    %v357 = vpow.pop %v356
    %v358 = vmul.f32 %v341, 1.442695
    %v359 = vpow.pop %v358
    %v360 = vmul.f32 %v342, 1.442695
    %v361 = vpow.pop %v360
    %v362 = vmul.f32 %v343, 1.442695
    %v363 = vpow.pop %v362
    %v364 = vmul.f32 %v344, 1.442695
    %v365 = vpow.pop %v364
    %v366 = vmul.f32 %v345, 1.442695
    %v367 = vpow.pop %v366
    %v368 = vmul.f32 %v346, 1.442695
    %v369 = vpow.pop %v368
    %v370 = vmul.f32 %v347, 1.442695
    %v371 = vpow.pop %v370
    %v372 = vmul.f32 %v348, 1.442695
    %v373 = vpow.pop %v372
    %v374 = vmul.f32 %v349, 1.442695
    %v375 = vpow.pop %v374
    %v376 = vmul.f32 %v350, 1.442695
    %v377 = vpow.pop %v376
    %v378 = vmul.f32 %v351, 1.442695
    %v379 = vpow.pop %v378
    %v380 = vmul.f32 %v352, 1.442695
    %v381 = vpow.pop %v380
    %v382 = vmul.f32 %v353, 1.442695
    %v383 = vpow.pop %v382
    %v384 = vmul.f32 %v354, 1.442695
    %v385 = vpow.pop %v384
    %v386 = vmul.f32 %v355, 1.442695
    %v387 = vpow.pop %v386
    %v388 = vadd.f32 %v357, 1.0
    %v389 = vadd.f32 %v359, 1.0
    %v390 = vadd.f32 %v361, 1.0
    %v391 = vadd.f32 %v363, 1.0
    %v392 = vadd.f32 %v365, 1.0
    %v393 = vadd.f32 %v367, 1.0
    %v394 = vadd.f32 %v369, 1.0
    %v395 = vadd.f32 %v371, 1.0
    %v396 = vadd.f32 %v373, 1.0
    %v397 = vadd.f32 %v375, 1.0
    %v398 = vadd.f32 %v377, 1.0
    %v399 = vadd.f32 %v379, 1.0
    %v400 = vadd.f32 %v381, 1.0
    %v401 = vadd.f32 %v383, 1.0
    %v402 = vadd.f32 %v385, 1.0
    %v403 = vadd.f32 %v387, 1.0
    %v404 = vrcp.pop %v388
    %v405 = vmul.f32 %v388, %v404
    %v406 = vsub.f32 1.0, %v405
    %v407 = vmul.f32 %v404, %v406
    %v408 = vadd.f32 %v404, %v407
    %vm409 = vweird.f32 %v388
    %vm410 = vweird.f32 %v404
    %vm411 = vmor %vm409, %vm410
    %v412 = vsel %vm411, %v404, %v408
    %v413 = vand.u32 2147483647, %v388
    %vm414 = vcmp.eq.f32.partialorder %v413, 8.507059e+37
    %v415 = vand.u32 %v388, 2147483648
    %v416 = vor.u32 1.1754944e-38, %v415
    %v417 = vsel %vm414, %v416, %v412
    %v418 = vmul.f32 1.0, %v417
    %v419 = vrcp.pop %v389
    %v420 = vmul.f32 %v389, %v419
    %v421 = vsub.f32 1.0, %v420
    %v422 = vmul.f32 %v419, %v421
    %v423 = vadd.f32 %v419, %v422
    %vm424 = vweird.f32 %v389
    %vm425 = vweird.f32 %v419
    %vm426 = vmor %vm424, %vm425
    %v427 = vsel %vm426, %v419, %v423
    %v428 = vand.u32 2147483647, %v389
    %vm429 = vcmp.eq.f32.partialorder %v428, 8.507059e+37
    %v430 = vand.u32 %v389, 2147483648
    %v431 = vor.u32 1.1754944e-38, %v430
    %v432 = vsel %vm429, %v431, %v427
    %v433 = vmul.f32 1.0, %v432
    %v434 = vrcp.pop %v390
    %v435 = vmul.f32 %v390, %v434
    %v436 = vsub.f32 1.0, %v435
    %v437 = vmul.f32 %v434, %v436
    %v438 = vadd.f32 %v434, %v437
    %vm439 = vweird.f32 %v390
    %vm440 = vweird.f32 %v434
    %vm441 = vmor %vm439, %vm440
    %v442 = vsel %vm441, %v434, %v438
    %v443 = vand.u32 2147483647, %v390
    %vm444 = vcmp.eq.f32.partialorder %v443, 8.507059e+37
    %v445 = vand.u32 %v390, 2147483648
    %v446 = vor.u32 1.1754944e-38, %v445
    %v447 = vsel %vm444, %v446, %v442
    %v448 = vmul.f32 1.0, %v447
    %v449 = vrcp.pop %v391
    %v450 = vmul.f32 %v391, %v449
    %v451 = vsub.f32 1.0, %v450
    %v452 = vmul.f32 %v449, %v451
    %v453 = vadd.f32 %v449, %v452
    %vm454 = vweird.f32 %v391
    %vm455 = vweird.f32 %v449
    %vm456 = vmor %vm454, %vm455
    %v457 = vsel %vm456, %v449, %v453
    %v458 = vand.u32 2147483647, %v391
    %vm459 = vcmp.eq.f32.partialorder %v458, 8.507059e+37
    %v460 = vand.u32 %v391, 2147483648
    %v461 = vor.u32 1.1754944e-38, %v460
    %v462 = vsel %vm459, %v461, %v457
    %v463 = vmul.f32 1.0, %v462
    %v464 = vrcp.pop %v392
    %v465 = vmul.f32 %v392, %v464
    %v466 = vsub.f32 1.0, %v465
    %v467 = vmul.f32 %v464, %v466
    %v468 = vadd.f32 %v464, %v467
    %vm469 = vweird.f32 %v392
    %vm470 = vweird.f32 %v464
    %vm471 = vmor %vm469, %vm470
    %v472 = vsel %vm471, %v464, %v468
    %v473 = vand.u32 2147483647, %v392
    %vm474 = vcmp.eq.f32.partialorder %v473, 8.507059e+37
    %v475 = vand.u32 %v392, 2147483648
    %v476 = vor.u32 1.1754944e-38, %v475
    %v477 = vsel %vm474, %v476, %v472
    %v478 = vmul.f32 1.0, %v477
    %v479 = vrcp.pop %v393
    %v480 = vmul.f32 %v393, %v479
    %v481 = vsub.f32 1.0, %v480
    %v482 = vmul.f32 %v479, %v481
    %v483 = vadd.f32 %v479, %v482
    %vm484 = vweird.f32 %v393
    %vm485 = vweird.f32 %v479
    %vm486 = vmor %vm484, %vm485
    %v487 = vsel %vm486, %v479, %v483
    %v488 = vand.u32 2147483647, %v393
    %vm489 = vcmp.eq.f32.partialorder %v488, 8.507059e+37
    %v490 = vand.u32 %v393, 2147483648
    %v491 = vor.u32 1.1754944e-38, %v490
    %v492 = vsel %vm489, %v491, %v487
    %v493 = vmul.f32 1.0, %v492
    %v494 = vrcp.pop %v394
    %v495 = vmul.f32 %v394, %v494
    %v496 = vsub.f32 1.0, %v495
    %v497 = vmul.f32 %v494, %v496
    %v498 = vadd.f32 %v494, %v497
    %vm499 = vweird.f32 %v394
    %vm500 = vweird.f32 %v494
    %vm501 = vmor %vm499, %vm500
    %v502 = vsel %vm501, %v494, %v498
    %v503 = vand.u32 2147483647, %v394
    %vm504 = vcmp.eq.f32.partialorder %v503, 8.507059e+37
    %v505 = vand.u32 %v394, 2147483648
    %v506 = vor.u32 1.1754944e-38, %v505
    %v507 = vsel %vm504, %v506, %v502
    %v508 = vmul.f32 1.0, %v507
    %v509 = vrcp.pop %v395
    %v510 = vmul.f32 %v395, %v509
    %v511 = vsub.f32 1.0, %v510
    %v512 = vmul.f32 %v509, %v511
    %v513 = vadd.f32 %v509, %v512
    %vm514 = vweird.f32 %v395
    %vm515 = vweird.f32 %v509
    %vm516 = vmor %vm514, %vm515
    %v517 = vsel %vm516, %v509, %v513
    %v518 = vand.u32 2147483647, %v395
    %vm519 = vcmp.eq.f32.partialorder %v518, 8.507059e+37
    %v520 = vand.u32 %v395, 2147483648
    %v521 = vor.u32 1.1754944e-38, %v520
    %v522 = vsel %vm519, %v521, %v517
    %v523 = vmul.f32 1.0, %v522
    %v524 = vrcp.pop %v396
    %v525 = vmul.f32 %v396, %v524
    %v526 = vsub.f32 1.0, %v525
    %v527 = vmul.f32 %v524, %v526
    %v528 = vadd.f32 %v524, %v527
    %vm529 = vweird.f32 %v396
    %vm530 = vweird.f32 %v524
    %vm531 = vmor %vm529, %vm530
    %v532 = vsel %vm531, %v524, %v528
    %v533 = vand.u32 2147483647, %v396
    %vm534 = vcmp.eq.f32.partialorder %v533, 8.507059e+37
    %v535 = vand.u32 %v396, 2147483648
    %v536 = vor.u32 1.1754944e-38, %v535
    %v537 = vsel %vm534, %v536, %v532
    %v538 = vmul.f32 1.0, %v537
    %v539 = vrcp.pop %v397
    %v540 = vmul.f32 %v397, %v539
    %v541 = vsub.f32 1.0, %v540
    %v542 = vmul.f32 %v539, %v541
    %v543 = vadd.f32 %v539, %v542
    %vm544 = vweird.f32 %v397
    %vm545 = vweird.f32 %v539
    %vm546 = vmor %vm544, %vm545
    %v547 = vsel %vm546, %v539, %v543
    %v548 = vand.u32 2147483647, %v397
    %vm549 = vcmp.eq.f32.partialorder %v548, 8.507059e+37
    %v550 = vand.u32 %v397, 2147483648
    %v551 = vor.u32 1.1754944e-38, %v550
    %v552 = vsel %vm549, %v551, %v547
    %v553 = vmul.f32 1.0, %v552
    %v554 = vrcp.pop %v398
    %v555 = vmul.f32 %v398, %v554
    %v556 = vsub.f32 1.0, %v555
    %v557 = vmul.f32 %v554, %v556
    %v558 = vadd.f32 %v554, %v557
    %vm559 = vweird.f32 %v398
    %vm560 = vweird.f32 %v554
    %vm561 = vmor %vm559, %vm560
    %v562 = vsel %vm561, %v554, %v558
    %v563 = vand.u32 2147483647, %v398
    %vm564 = vcmp.eq.f32.partialorder %v563, 8.507059e+37
    %v565 = vand.u32 %v398, 2147483648
    %v566 = vor.u32 1.1754944e-38, %v565
    %v567 = vsel %vm564, %v566, %v562
    %v568 = vmul.f32 1.0, %v567
    %v569 = vrcp.pop %v399
    %v570 = vmul.f32 %v399, %v569
    %v571 = vsub.f32 1.0, %v570
    %v572 = vmul.f32 %v569, %v571
    %v573 = vadd.f32 %v569, %v572
    %vm574 = vweird.f32 %v399
    %vm575 = vweird.f32 %v569
    %vm576 = vmor %vm574, %vm575
    %v577 = vsel %vm576, %v569, %v573
    %v578 = vand.u32 2147483647, %v399
    %vm579 = vcmp.eq.f32.partialorder %v578, 8.507059e+37
    %v580 = vand.u32 %v399, 2147483648
    %v581 = vor.u32 1.1754944e-38, %v580
    %v582 = vsel %vm579, %v581, %v577
    %v583 = vmul.f32 1.0, %v582
    %v584 = vrcp.pop %v400
    %v585 = vmul.f32 %v400, %v584
    %v586 = vsub.f32 1.0, %v585
    %v587 = vmul.f32 %v584, %v586
    %v588 = vadd.f32 %v584, %v587
    %vm589 = vweird.f32 %v400
    %vm590 = vweird.f32 %v584
    %vm591 = vmor %vm589, %vm590
    %v592 = vsel %vm591, %v584, %v588
    %v593 = vand.u32 2147483647, %v400
    %vm594 = vcmp.eq.f32.partialorder %v593, 8.507059e+37
    %v595 = vand.u32 %v400, 2147483648
    %v596 = vor.u32 1.1754944e-38, %v595
    %v597 = vsel %vm594, %v596, %v592
    %v598 = vmul.f32 1.0, %v597
    %v599 = vrcp.pop %v401
    %v600 = vmul.f32 %v401, %v599
    %v601 = vsub.f32 1.0, %v600
    %v602 = vmul.f32 %v599, %v601
    %v603 = vadd.f32 %v599, %v602
    %vm604 = vweird.f32 %v401
    %vm605 = vweird.f32 %v599
    %vm606 = vmor %vm604, %vm605
    %v607 = vsel %vm606, %v599, %v603
    %v608 = vand.u32 2147483647, %v401
    %vm609 = vcmp.eq.f32.partialorder %v608, 8.507059e+37
    %v610 = vand.u32 %v401, 2147483648
    %v611 = vor.u32 1.1754944e-38, %v610
    %v612 = vsel %vm609, %v611, %v607
    %v613 = vmul.f32 1.0, %v612
    %v614 = vrcp.pop %v402
    %v615 = vmul.f32 %v402, %v614
    %v616 = vsub.f32 1.0, %v615
    %v617 = vmul.f32 %v614, %v616
    %v618 = vadd.f32 %v614, %v617
    %vm619 = vweird.f32 %v402
    %vm620 = vweird.f32 %v614
    %vm621 = vmor %vm619, %vm620
    %v622 = vsel %vm621, %v614, %v618
    %v623 = vand.u32 2147483647, %v402
    %vm624 = vcmp.eq.f32.partialorder %v623, 8.507059e+37
    %v625 = vand.u32 %v402, 2147483648
    %v626 = vor.u32 1.1754944e-38, %v625
    %v627 = vsel %vm624, %v626, %v622
    %v628 = vmul.f32 1.0, %v627
    %v629 = vrcp.pop %v403
    %v630 = vmul.f32 %v403, %v629
    %v631 = vsub.f32 1.0, %v630
    %v632 = vmul.f32 %v629, %v631
    %v633 = vadd.f32 %v629, %v632
    %vm634 = vweird.f32 %v403
    %vm635 = vweird.f32 %v629
    %vm636 = vmor %vm634, %vm635
    %v637 = vsel %vm636, %v629, %v633
    %v638 = vand.u32 2147483647, %v403
    %vm639 = vcmp.eq.f32.partialorder %v638, 8.507059e+37
    %v640 = vand.u32 %v403, 2147483648
    %v641 = vor.u32 1.1754944e-38, %v640
    %v642 = vsel %vm639, %v641, %v637
    %v643 = vmul.f32 1.0, %v642
    %v644 = vmul.f32 %v252, %v418
    %v645 = vmul.f32 %v254, %v433
    %v646 = vmul.f32 %v257, %v448
    %v647 = vmul.f32 %v259, %v463
    %v648 = vmul.f32 %v262, %v478
    %v649 = vmul.f32 %v264, %v493
    %v650 = vmul.f32 %v267, %v508
    %v651 = vmul.f32 %v269, %v523
    %v652 = vmul.f32 %v272, %v538
    %v653 = vmul.f32 %v274, %v553
    %v654 = vmul.f32 %v277, %v568
    %v655 = vmul.f32 %v279, %v583
    %v656 = vmul.f32 %v282, %v598
    %v657 = vmul.f32 %v284, %v613
    %v658 = vmul.f32 %v287, %v628
    %v659 = vmul.f32 %v289, %v643
    %v660 = vmul.f32 %v644, %v301
    %v661 = vmul.f32 %v645, %v303
    %v662 = vmul.f32 %v646, %v306
    %v663 = vmul.f32 %v647, %v308
    %v664 = vmul.f32 %v648, %v311
    %v665 = vmul.f32 %v649, %v313
    %v666 = vmul.f32 %v650, %v316
    %v667 = vmul.f32 %v651, %v318
    %v668 = vmul.f32 %v652, %v321
    %v669 = vmul.f32 %v653, %v323
    %v670 = vmul.f32 %v654, %v326
    %v671 = vmul.f32 %v655, %v328
    %v672 = vmul.f32 %v656, %v331
    %v673 = vmul.f32 %v657, %v333
    %v674 = vmul.f32 %v658, %v336
    %v675 = vmul.f32 %v659, %v338
    %v676 = vld [vmem:[#allocation2] sm:$0xff]
    %v677 = vld [vmem:[#allocation2 + $0x8] sm:$0xff]
    %v678 = vld [vmem:[#allocation2 + $0x10] sm:$0xff]
    %v679 = vld [vmem:[#allocation2 + $0x18] sm:$0xff]
    %v680 = vld [vmem:[#allocation2 + $0x20] sm:$0xff]
    %v681 = vld [vmem:[#allocation2 + $0x28] sm:$0xff]
    %v682 = vld [vmem:[#allocation2 + $0x30] sm:$0xff]
    %v683 = vld [vmem:[#allocation2 + $0x38] sm:$0xff]
    %v684 = vld [vmem:[#allocation2 + $0x40] sm:$0xff]
    %v685 = vld [vmem:[#allocation2 + $0x48] sm:$0xff]
    %v686 = vld [vmem:[#allocation2 + $0x50] sm:$0xff]
    %v687 = vld [vmem:[#allocation2 + $0x58] sm:$0xff]
    %v688 = vld [vmem:[#allocation2 + $0x60] sm:$0xff]
    %v689 = vld [vmem:[#allocation2 + $0x68] sm:$0xff]
    %v690 = vld [vmem:[#allocation2 + $0x70] sm:$0xff]
    %v691 = vld [vmem:[#allocation2 + $0x78] sm:$0xff]
    %v692 = vpack.c.bf16 %v661, %v660
    %v693 = vpack.c.bf16 %v663, %v662
    %v694 = vpack.c.bf16 %v665, %v664
    %v695 = vpack.c.bf16 %v667, %v666
    %v696 = vpack.c.bf16 %v669, %v668
    %v697 = vpack.c.bf16 %v671, %v670
    %v698 = vpack.c.bf16 %v673, %v672
    %v699 = vpack.c.bf16 %v675, %v674
    %v700 = vld [vmem:[#allocation8] sm:$0xf]
    %v701 = vld [vmem:[#allocation8 + $0x4] sm:$0xf]
    %v702 = vld [vmem:[#allocation8 + $0x8] sm:$0xf]
    %v703 = vld [vmem:[#allocation8 + $0xc] sm:$0xf]
    %v704 = vld [vmem:[#allocation8 + $0x10] sm:$0xf]
    %v705 = vld [vmem:[#allocation8 + $0x14] sm:$0xf]
    %v706 = vld [vmem:[#allocation8 + $0x18] sm:$0xf]
    %v707 = vld [vmem:[#allocation8 + $0x1c] sm:$0xf]
    %v708 = vld [vmem:[#allocation8 + $0x20] sm:$0xf]
    %v709 = vld [vmem:[#allocation8 + $0x24] sm:$0xf]
    %v710 = vld [vmem:[#allocation8 + $0x28] sm:$0xf]
    %v711 = vld [vmem:[#allocation8 + $0x2c] sm:$0xf]
    %v712 = vld [vmem:[#allocation8 + $0x30] sm:$0xf]
    %v713 = vld [vmem:[#allocation8 + $0x34] sm:$0xf]
    %v714 = vld [vmem:[#allocation8 + $0x38] sm:$0xf]
    %v715 = vld [vmem:[#allocation8 + $0x3c] sm:$0xf]
    %v732 = vunpack.c.l.b16 %v700
    %v733 = vunpack.c.l.b16 %v701
    %v734 = vunpack.c.l.b16 %v702
    %v735 = vunpack.c.l.b16 %v703
    %v736 = vunpack.c.l.b16 %v704
    %v737 = vunpack.c.l.b16 %v705
    %v738 = vunpack.c.l.b16 %v706
    %v739 = vunpack.c.l.b16 %v707
    %v740 = vunpack.c.l.b16 %v708
    %v741 = vunpack.c.l.b16 %v709
    %v742 = vunpack.c.l.b16 %v710
    %v743 = vunpack.c.l.b16 %v711
    %v744 = vunpack.c.l.b16 %v712
    %v745 = vunpack.c.l.b16 %v713
    %v746 = vunpack.c.l.b16 %v714
    %v747 = vunpack.c.l.b16 %v715
    %v748 = vpack.c.b16 %v733, %v732
    %v749 = vpack.c.b16 %v735, %v734
    %v750 = vpack.c.b16 %v737, %v736
    %v751 = vpack.c.b16 %v739, %v738
    %v752 = vpack.c.b16 %v741, %v740
    %v753 = vpack.c.b16 %v743, %v742
    %v754 = vpack.c.b16 %v745, %v744
    %v755 = vpack.c.b16 %v747, %v746
    %764 = vmatpush.bf16.msra.mxu0 %v755
    %765 = vmatpush.bf16.msra.mxu0 %v754
    %766 = vmatpush.bf16.msra.mxu0 %v753
    %767 = vmatpush.bf16.msra.mxu0 %v752
    %768 = vmatpush.bf16.msra.mxu0 %v751
    %769 = vmatpush.bf16.msra.mxu0 %v750
    %770 = vmatpush.bf16.msra.mxu0 %v749
    %771 = vmatpush.bf16.msra.mxu0 %v748
    %772 = vmatmul.bf16.gmra.mxu0 %v692
    %v773 = vpop.f32.mrf.mxu0
    %v774 = vadd.f32 0.0, %v773
    %v775 = vpop.f32.mrf.mxu0
    %v776 = vadd.f32 0.0, %v775
    %777 = vmatmul.bf16.gmra.mxu0 %v693
    %v778 = vpop.f32.mrf.mxu0
    %v779 = vadd.f32 0.0, %v778
    %v780 = vpop.f32.mrf.mxu0
    %v781 = vadd.f32 0.0, %v780
    %782 = vmatmul.bf16.gmra.mxu0 %v694
    %v783 = vpop.f32.mrf.mxu0
    %v784 = vadd.f32 0.0, %v783
    %v785 = vpop.f32.mrf.mxu0
    %v786 = vadd.f32 0.0, %v785
    %787 = vmatmul.bf16.gmra.mxu0 %v695
    %v788 = vpop.f32.mrf.mxu0
    %v789 = vadd.f32 0.0, %v788
    %v790 = vpop.f32.mrf.mxu0
    %v791 = vadd.f32 0.0, %v790
    %792 = vmatmul.bf16.gmra.mxu0 %v696
    %v793 = vpop.f32.mrf.mxu0
    %v794 = vadd.f32 0.0, %v793
    %v795 = vpop.f32.mrf.mxu0
    %v796 = vadd.f32 0.0, %v795
    %797 = vmatmul.bf16.gmra.mxu0 %v697
    %v798 = vpop.f32.mrf.mxu0
    %v799 = vadd.f32 0.0, %v798
    %v800 = vpop.f32.mrf.mxu0
    %v801 = vadd.f32 0.0, %v800
    %802 = vmatmul.bf16.gmra.mxu0 %v698
    %v803 = vpop.f32.mrf.mxu0
    %v804 = vadd.f32 0.0, %v803
    %v805 = vpop.f32.mrf.mxu0
    %v806 = vadd.f32 0.0, %v805
    %807 = vmatmul.bf16.gmra.mxu0 %v699
    %v808 = vpop.f32.mrf.mxu0
    %v809 = vadd.f32 0.0, %v808
    %v810 = vpop.f32.mrf.mxu0
    %v811 = vadd.f32 0.0, %v810
    %812 = vdwg.mxu0
    %v813 = vadd.f32 %v676, %v774
    %v814 = vadd.f32 %v677, %v776
    %v815 = vadd.f32 %v678, %v779
    %v816 = vadd.f32 %v679, %v781
    %v817 = vadd.f32 %v680, %v784
    %v818 = vadd.f32 %v681, %v786
    %v819 = vadd.f32 %v682, %v789
    %v820 = vadd.f32 %v683, %v791
    %v821 = vadd.f32 %v684, %v794
    %v822 = vadd.f32 %v685, %v796
    %v823 = vadd.f32 %v686, %v799
    %v824 = vadd.f32 %v687, %v801
    %v825 = vadd.f32 %v688, %v804
    %v826 = vadd.f32 %v689, %v806
    %v827 = vadd.f32 %v690, %v809
    %v828 = vadd.f32 %v691, %v811
    %829 = vst [vmem:[#allocation2] sm:$0xff] %v813
    %830 = vst [vmem:[#allocation2 + $0x8] sm:$0xff] %v814
    %831 = vst [vmem:[#allocation2 + $0x10] sm:$0xff] %v815
    %832 = vst [vmem:[#allocation2 + $0x18] sm:$0xff] %v816
    %833 = vst [vmem:[#allocation2 + $0x20] sm:$0xff] %v817
    %834 = vst [vmem:[#allocation2 + $0x28] sm:$0xff] %v818
    %835 = vst [vmem:[#allocation2 + $0x30] sm:$0xff] %v819
    %836 = vst [vmem:[#allocation2 + $0x38] sm:$0xff] %v820
    %837 = vst [vmem:[#allocation2 + $0x40] sm:$0xff] %v821
    %838 = vst [vmem:[#allocation2 + $0x48] sm:$0xff] %v822
    %839 = vst [vmem:[#allocation2 + $0x50] sm:$0xff] %v823
    %840 = vst [vmem:[#allocation2 + $0x58] sm:$0xff] %v824
    %841 = vst [vmem:[#allocation2 + $0x60] sm:$0xff] %v825
    %842 = vst [vmem:[#allocation2 + $0x68] sm:$0xff] %v826
    %843 = vst [vmem:[#allocation2 + $0x70] sm:$0xff] %v827
    %844 = vst [vmem:[#allocation2 + $0x78] sm:$0xff] %v828
    // Predicated region
    $region30: #{tpu_custom_call.1} parent=1 // pred_check
      %p845 = pneg %p62
    $region31: #{tpu_custom_call.1} parent=1 // pred_check_branch
      %847 = sbr.rel (%p845) target = $region33
    $region32: #{tpu_custom_call.1} parent=1 // pred_region
      %v848 = vld [vmem:[#allocation2] sm:$0xff]
      %v849 = vld [vmem:[#allocation2 + $0x8] sm:$0xff]
      %v850 = vld [vmem:[#allocation2 + $0x10] sm:$0xff]
      %v851 = vld [vmem:[#allocation2 + $0x18] sm:$0xff]
      %v852 = vld [vmem:[#allocation2 + $0x20] sm:$0xff]
      %v853 = vld [vmem:[#allocation2 + $0x28] sm:$0xff]
      %v854 = vld [vmem:[#allocation2 + $0x30] sm:$0xff]
      %v855 = vld [vmem:[#allocation2 + $0x38] sm:$0xff]
      %v856 = vld [vmem:[#allocation2 + $0x40] sm:$0xff]
      %v857 = vld [vmem:[#allocation2 + $0x48] sm:$0xff]
      %v858 = vld [vmem:[#allocation2 + $0x50] sm:$0xff]
      %v859 = vld [vmem:[#allocation2 + $0x58] sm:$0xff]
      %v860 = vld [vmem:[#allocation2 + $0x60] sm:$0xff]
      %v861 = vld [vmem:[#allocation2 + $0x68] sm:$0xff]
      %v862 = vld [vmem:[#allocation2 + $0x70] sm:$0xff]
      %v863 = vld [vmem:[#allocation2 + $0x78] sm:$0xff]
      %864 = vst [vmem:[#allocation9] sm:$0xff] %v848
      %865 = vst [vmem:[#allocation9 + $0x8] sm:$0xff] %v849
      %866 = vst [vmem:[#allocation9 + $0x10] sm:$0xff] %v850
      %867 = vst [vmem:[#allocation9 + $0x18] sm:$0xff] %v851
      %868 = vst [vmem:[#allocation9 + $0x20] sm:$0xff] %v852
      %869 = vst [vmem:[#allocation9 + $0x28] sm:$0xff] %v853
      %870 = vst [vmem:[#allocation9 + $0x30] sm:$0xff] %v854
      %871 = vst [vmem:[#allocation9 + $0x38] sm:$0xff] %v855
      %872 = vst [vmem:[#allocation9 + $0x40] sm:$0xff] %v856
      %873 = vst [vmem:[#allocation9 + $0x48] sm:$0xff] %v857
      %874 = vst [vmem:[#allocation9 + $0x50] sm:$0xff] %v858
      %875 = vst [vmem:[#allocation9 + $0x58] sm:$0xff] %v859
      %876 = vst [vmem:[#allocation9 + $0x60] sm:$0xff] %v860
      %877 = vst [vmem:[#allocation9 + $0x68] sm:$0xff] %v861
      %878 = vst [vmem:[#allocation9 + $0x70] sm:$0xff] %v862
      %879 = vst [vmem:[#allocation9 + $0x78] sm:$0xff] %v863
    $region33: #{tpu_custom_call.1} parent=1 // pred_fallthru
      _
    // Predicated region
    $region34: #{tpu_custom_call.1} parent=1 // pred_check
      _
    $region35: #{tpu_custom_call.1} parent=1 // pred_check_branch
      %881 = sbr.rel (0) target = $region37
    $region36: #{tpu_custom_call.1} parent=1 // pred_region
      %883 = vsyncadd [#allocation5], 0
      %s884 = sshll.u32 [#allocation9], 4
      %s885 = int_to_ptr.vmem [resolvable:$true] %s884
      %s886 = sshll.u32 %s3, 4
      %s887 = int_to_ptr.hbm [resolvable:$true] %s886
      %892 = dma.vmem_to_hbm [thread:$0]  %s885, 2048, %s887, [#allocation5], 128, 128, 8
    $region37: #{tpu_custom_call.1} parent=1 // pred_fallthru
      _
    // Predicated region
    $region38: #{tpu_custom_call.1} parent=1 // pred_check
      _
    $region39: #{tpu_custom_call.1} parent=1 // pred_check_branch
      %894 = sbr.rel (0) target = $region41
    $region40: #{tpu_custom_call.1} parent=1 // pred_region
      %896 = dma.done [#allocation5], 2048
    $region41: #{tpu_custom_call.1} parent=1 // pred_fallthru
      _
    %897 = vsyncpa [#allocation4], 1
    %898 = vsyncpa [#allocation7], 1
    %899 = vsyncpa [#allocation5], 1

</llo_original>
